<compile_context>
chip_gen: v5e
topology: v5e:2x2
jax: 0.10.0
libtpu: 0.0.40
codegen_flags: <defaults>
</compile_context>

<pallas_src>
import numpy as np

import jax
import jax.numpy as jnp
from jax import lax
from jax.experimental import pallas as pl
from jax.experimental.pallas import tpu as pltpu

LANE = 128
ROW_ALIGN = 16        # keeps the half-tile split sublane aligned, bf16 friendly
MAX_TILE_ROWS = 1024  # (1024,128) f32 tile = 512 KiB; in+out double-buffered ~2 MiB

# murmur3 constants as signed int32 literals (two's complement)
_GOLDEN = -1640531527    # 0x9E3779B9
_FMIX_M1 = -2048144789   # 0x85EBCA6B
_FMIX_M2 = -1028477867   # 0xC2B2AE35


def _fmix32(h):
    """Murmur3 finalizer on int32 values (logical shifts emulated via masks)."""
    h = h ^ ((h >> 16) & jnp.int32(0xFFFF))
    h = h * jnp.int32(_FMIX_M1)
    h = h ^ ((h >> 13) & jnp.int32(0x7FFFF))
    h = h * jnp.int32(_FMIX_M2)
    h = h ^ ((h >> 16) & jnp.int32(0xFFFF))
    return h


def _bits_to_uniform(bits_i32):
    """int32 hash bits -> uniform float32 in (0, 1) using 23 low bits."""
    m = jnp.bitwise_and(bits_i32, jnp.int32(0x7FFFFF))
    return (m.astype(jnp.float32) + 0.5) * jnp.float32(1.0 / (1 << 23))


def _mul_gaussian_noise_kernel(seed_ref, scale_ref, x_ref, o_ref):
    tile_rows, lane = x_ref.shape
    half = tile_rows // 2
    pid = pl.program_id(0)

    seed = seed_ref[0, 0]      # int32
    scale = scale_ref[0, 0]    # float32, already |std| * rescaler

    # Counter-based PRNG: global draw index = pid*tile_elems + 2*local + {0,1},
    # mixed with the seed and hashed.  Independent per element and per tile.
    row = lax.broadcasted_iota(jnp.int32, (half, lane), 0)
    col = lax.broadcasted_iota(jnp.int32, (half, lane), 1)
    local = row * lane + col
    base = pid * (tile_rows * lane)
    sk = seed * jnp.int32(_GOLDEN)

    d0 = base + 2 * local
    h0 = _fmix32(d0 ^ sk)
    h1 = _fmix32((d0 + 1) ^ sk)

    u1 = _bits_to_uniform(h0)
    u2 = _bits_to_uniform(h1)

    # Box-Muller; use BOTH outputs (halves transcendental + hash work).
    # Fold the scalar scale into the radius once per pair of normals.
    r = jnp.sqrt(-2.0 * jnp.log(u1)) * scale
    theta = jnp.float32(2.0 * np.pi) * u2
    z1 = r * jnp.cos(theta)
    z2 = r * jnp.sin(theta)

    o_ref[:half, :] = (x_ref[:half, :].astype(jnp.float32) * z1).astype(o_ref.dtype)
    o_ref[half:, :] = (x_ref[half:, :].astype(jnp.float32) * z2).astype(o_ref.dtype)


def multiply_gaussian_noise(x, std, seed, *, normalize_to_input_size=False):
    """x: any shape (NCHW here). std: shape (1,) parameter. seed: int32 scalar."""
    orig_shape = x.shape
    n = int(np.prod(orig_shape))
    rescaler = (
        1.0 / float(np.prod(orig_shape[1:])) if normalize_to_input_size else 1.0
    )

    # Lane-dense 2-D slab (rows, 128); rows is a multiple of tile_rows.
    rows_needed = pl.cdiv(n, LANE)
    if rows_needed >= MAX_TILE_ROWS:
        tile_rows = MAX_TILE_ROWS
    else:
        tile_rows = int(pl.cdiv(rows_needed, ROW_ALIGN)) * ROW_ALIGN
    num_tiles = int(pl.cdiv(rows_needed, tile_rows))
    rows = num_tiles * tile_rows

    flat = x.reshape(-1)                     # keep native dtype (no f32 up-cast pass)
    pad = rows * LANE - n
    if pad:
        flat = jnp.pad(flat, (0, pad))
    x2d = flat.reshape(rows, LANE)

    seed_arr = jnp.asarray(seed, dtype=jnp.int32).reshape(1, 1)
    scale_arr = (jnp.abs(jnp.asarray(std, dtype=jnp.float32)) * rescaler).reshape(1, 1)

    out2d = pl.pallas_call(
        _mul_gaussian_noise_kernel,
        out_shape=jax.ShapeDtypeStruct((rows, LANE), x.dtype),
        grid=(num_tiles,),
        in_specs=[
            pl.BlockSpec((1, 1), lambda i: (0, 0)),              # seed
            pl.BlockSpec((1, 1), lambda i: (0, 0)),              # |std| * rescaler
            pl.BlockSpec((tile_rows, LANE), lambda i: (i, 0)),   # data tile
        ],
        out_specs=pl.BlockSpec((tile_rows, LANE), lambda i: (i, 0)),
        compiler_params=pltpu.CompilerParams(
            dimension_semantics=("parallel",)  # tiles fully independent (v7x: 2 TCs)
        ),
    )(seed_arr, scale_arr, x2d)

    return out2d.reshape(-1)[:n].reshape(orig_shape)


if __name__ == "__main__":
    key = jax.random.PRNGKey(0)

    # Module parameters (deterministic, as in __init__(mean=0.0, std=1.0)).
    std_param = jnp.array([1.0], dtype=jnp.float32)  # nn.Parameter(torch.Tensor([std]))
    normalize_to_input_size = False

    # Example NCHW input.
    x = jax.random.normal(key, (2, 4, 16, 16), dtype=jnp.float32)

    out = multiply_gaussian_noise(
        x, std_param, seed=1234, normalize_to_input_size=normalize_to_input_size
    )
    out = jax.block_until_ready(out)

    assert out.shape == x.shape and out.dtype == x.dtype
    assert bool(jnp.all(jnp.isfinite(out)))
    # Sanity: the implied multiplicative noise should be ~ N(0, std^2).
    noise = out / jnp.where(jnp.abs(x) > 1e-6, x, 1.0)
    assert 0.5 < float(jnp.std(noise)) < 2.0

    print("KERNEL_OK")
</pallas_src>

<mosaic_0001>
module attributes {stable_mosaic.version = 11 : i64} {
  func.func @_mul_gaussian_noise_kernel(%arg0: i32, %arg1: memref<1x1xi32, #tpu.memory_space<vmem>>, %arg2: memref<1x1xf32, #tpu.memory_space<vmem>>, %arg3: memref<16x128xf32, #tpu.memory_space<vmem>>, %arg4: memref<16x128xf32, #tpu.memory_space<vmem>>) attributes {dimension_semantics = [#tpu.dimension_semantics<parallel>], iteration_bounds = array<i64: 1>, scalar_prefetch = 0 : i64, scratch_operands = 0 : i64, tpu.core_type = #tpu.core_type<tc>, window_params = [{pipeline_mode = #tpu.pipeline_mode<synchronous>, transform_indices = @transform_0, window_bounds = array<i64: 1, 1>}, {pipeline_mode = #tpu.pipeline_mode<synchronous>, transform_indices = @transform_1, window_bounds = array<i64: 1, 1>}, {transform_indices = @transform_2, window_bounds = array<i64: 16, 128>}, {transform_indices = @transform_3, window_bounds = array<i64: 16, 128>}]} {
    %c0 = arith.constant 0 : index
    %c0_0 = arith.constant 0 : index
    %0 = vector.load %arg1[%c0, %c0_0] : memref<1x1xi32, #tpu.memory_space<vmem>>, vector<1x1xi32>
    %1 = vector.extract %0[0, 0] : i32 from vector<1x1xi32>
    %c0_1 = arith.constant 0 : index
    %c0_2 = arith.constant 0 : index
    %2 = vector.load %arg2[%c0_1, %c0_2] : memref<1x1xf32, #tpu.memory_space<vmem>>, vector<1x1xf32>
    %3 = vector.extract %2[0, 0] : f32 from vector<1x1xf32>
    %4 = tpu.iota {dimensions = array<i32: 0>} : vector<8x128xi32>
    %5 = tpu.iota {dimensions = array<i32: 1>} : vector<8x128xi32>
    %c128_i32 = arith.constant 128 : i32
    %6 = vector.broadcast %c128_i32 : i32 to vector<8x128xi32>
    %7 = arith.muli %4, %6 : vector<8x128xi32>
    %8 = arith.addi %7, %5 : vector<8x128xi32>
    %c2048_i32 = arith.constant 2048 : i32
    %9 = arith.muli %arg0, %c2048_i32 : i32
    %c-1640531527_i32 = arith.constant -1640531527 : i32
    %10 = arith.muli %1, %c-1640531527_i32 : i32
    %c2_i32 = arith.constant 2 : i32
    %11 = vector.broadcast %c2_i32 : i32 to vector<8x128xi32>
    %12 = arith.muli %11, %8 : vector<8x128xi32>
    %13 = vector.broadcast %9 : i32 to vector<8x128xi32>
    %14 = arith.addi %13, %12 : vector<8x128xi32>
    %15 = vector.broadcast %10 : i32 to vector<8x128xi32>
    %16 = arith.xori %14, %15 : vector<8x128xi32>
    %c16_i32 = arith.constant 16 : i32
    %17 = vector.broadcast %c16_i32 : i32 to vector<8x128xi32>
    %18 = arith.shrsi %16, %17 : vector<8x128xi32>
    %c65535_i32 = arith.constant 65535 : i32
    %19 = vector.broadcast %c65535_i32 : i32 to vector<8x128xi32>
    %20 = arith.andi %18, %19 : vector<8x128xi32>
    %21 = arith.xori %16, %20 : vector<8x128xi32>
    %c-2048144789_i32 = arith.constant -2048144789 : i32
    %22 = vector.broadcast %c-2048144789_i32 : i32 to vector<8x128xi32>
    %23 = arith.muli %21, %22 : vector<8x128xi32>
    %c13_i32 = arith.constant 13 : i32
    %24 = vector.broadcast %c13_i32 : i32 to vector<8x128xi32>
    %25 = arith.shrsi %23, %24 : vector<8x128xi32>
    %c524287_i32 = arith.constant 524287 : i32
    %26 = vector.broadcast %c524287_i32 : i32 to vector<8x128xi32>
    %27 = arith.andi %25, %26 : vector<8x128xi32>
    %28 = arith.xori %23, %27 : vector<8x128xi32>
    %c-1028477867_i32 = arith.constant -1028477867 : i32
    %29 = vector.broadcast %c-1028477867_i32 : i32 to vector<8x128xi32>
    %30 = arith.muli %28, %29 : vector<8x128xi32>
    %c16_i32_3 = arith.constant 16 : i32
    %31 = vector.broadcast %c16_i32_3 : i32 to vector<8x128xi32>
    %32 = arith.shrsi %30, %31 : vector<8x128xi32>
    %c65535_i32_4 = arith.constant 65535 : i32
    %33 = vector.broadcast %c65535_i32_4 : i32 to vector<8x128xi32>
    %34 = arith.andi %32, %33 : vector<8x128xi32>
    %35 = arith.xori %30, %34 : vector<8x128xi32>
    %c1_i32 = arith.constant 1 : i32
    %36 = vector.broadcast %c1_i32 : i32 to vector<8x128xi32>
    %37 = arith.addi %14, %36 : vector<8x128xi32>
    %38 = vector.broadcast %10 : i32 to vector<8x128xi32>
    %39 = arith.xori %37, %38 : vector<8x128xi32>
    %c16_i32_5 = arith.constant 16 : i32
    %40 = vector.broadcast %c16_i32_5 : i32 to vector<8x128xi32>
    %41 = arith.shrsi %39, %40 : vector<8x128xi32>
    %c65535_i32_6 = arith.constant 65535 : i32
    %42 = vector.broadcast %c65535_i32_6 : i32 to vector<8x128xi32>
    %43 = arith.andi %41, %42 : vector<8x128xi32>
    %44 = arith.xori %39, %43 : vector<8x128xi32>
    %c-2048144789_i32_7 = arith.constant -2048144789 : i32
    %45 = vector.broadcast %c-2048144789_i32_7 : i32 to vector<8x128xi32>
    %46 = arith.muli %44, %45 : vector<8x128xi32>
    %c13_i32_8 = arith.constant 13 : i32
    %47 = vector.broadcast %c13_i32_8 : i32 to vector<8x128xi32>
    %48 = arith.shrsi %46, %47 : vector<8x128xi32>
    %c524287_i32_9 = arith.constant 524287 : i32
    %49 = vector.broadcast %c524287_i32_9 : i32 to vector<8x128xi32>
    %50 = arith.andi %48, %49 : vector<8x128xi32>
    %51 = arith.xori %46, %50 : vector<8x128xi32>
    %c-1028477867_i32_10 = arith.constant -1028477867 : i32
    %52 = vector.broadcast %c-1028477867_i32_10 : i32 to vector<8x128xi32>
    %53 = arith.muli %51, %52 : vector<8x128xi32>
    %c16_i32_11 = arith.constant 16 : i32
    %54 = vector.broadcast %c16_i32_11 : i32 to vector<8x128xi32>
    %55 = arith.shrsi %53, %54 : vector<8x128xi32>
    %c65535_i32_12 = arith.constant 65535 : i32
    %56 = vector.broadcast %c65535_i32_12 : i32 to vector<8x128xi32>
    %57 = arith.andi %55, %56 : vector<8x128xi32>
    %58 = arith.xori %53, %57 : vector<8x128xi32>
    %c8388607_i32 = arith.constant 8388607 : i32
    %59 = vector.broadcast %c8388607_i32 : i32 to vector<8x128xi32>
    %60 = arith.andi %35, %59 : vector<8x128xi32>
    %61 = arith.sitofp %60 : vector<8x128xi32> to vector<8x128xf32>
    %cst = arith.constant 5.000000e-01 : f32
    %62 = vector.broadcast %cst : f32 to vector<8x128xf32>
    %63 = arith.addf %61, %62 : vector<8x128xf32>
    %cst_13 = arith.constant 1.1920929E-7 : f32
    %64 = vector.broadcast %cst_13 : f32 to vector<8x128xf32>
    %65 = arith.mulf %63, %64 : vector<8x128xf32>
    %c8388607_i32_14 = arith.constant 8388607 : i32
    %66 = vector.broadcast %c8388607_i32_14 : i32 to vector<8x128xi32>
    %67 = arith.andi %58, %66 : vector<8x128xi32>
    %68 = arith.sitofp %67 : vector<8x128xi32> to vector<8x128xf32>
    %cst_15 = arith.constant 5.000000e-01 : f32
    %69 = vector.broadcast %cst_15 : f32 to vector<8x128xf32>
    %70 = arith.addf %68, %69 : vector<8x128xf32>
    %cst_16 = arith.constant 1.1920929E-7 : f32
    %71 = vector.broadcast %cst_16 : f32 to vector<8x128xf32>
    %72 = arith.mulf %70, %71 : vector<8x128xf32>
    %73 = math.log %65 : vector<8x128xf32>
    %cst_17 = arith.constant -2.000000e+00 : f32
    %74 = vector.broadcast %cst_17 : f32 to vector<8x128xf32>
    %75 = arith.mulf %74, %73 : vector<8x128xf32>
    %76 = math.sqrt %75 : vector<8x128xf32>
    %77 = vector.broadcast %3 : f32 to vector<8x128xf32>
    %78 = arith.mulf %76, %77 : vector<8x128xf32>
    %cst_18 = arith.constant 6.28318548 : f32
    %79 = vector.broadcast %cst_18 : f32 to vector<8x128xf32>
    %80 = arith.mulf %79, %72 : vector<8x128xf32>
    %81 = math.cos %80 : vector<8x128xf32>
    %82 = arith.mulf %78, %81 : vector<8x128xf32>
    %83 = math.sin %80 : vector<8x128xf32>
    %84 = arith.mulf %78, %83 : vector<8x128xf32>
    %c0_19 = arith.constant 0 : index
    %c0_20 = arith.constant 0 : index
    %85 = vector.load %arg3[%c0_19, %c0_20] : memref<16x128xf32, #tpu.memory_space<vmem>>, vector<8x128xf32>
    %86 = arith.mulf %85, %82 : vector<8x128xf32>
    %c0_21 = arith.constant 0 : index
    %c0_22 = arith.constant 0 : index
    %87 = vector.load %arg4[%c0_21, %c0_22] : memref<16x128xf32, #tpu.memory_space<vmem>>, vector<8x128xf32>
    tpu.vector_store %arg4[%c0_21, %c0_22], %86 {strides = array<i32>} : memref<16x128xf32, #tpu.memory_space<vmem>>, vector<8x128xf32>,
    %c8 = arith.constant 8 : index
    %c0_23 = arith.constant 0 : index
    %88 = vector.load %arg3[%c8, %c0_23] : memref<16x128xf32, #tpu.memory_space<vmem>>, vector<8x128xf32>
    %89 = arith.mulf %88, %84 : vector<8x128xf32>
    %c8_24 = arith.constant 8 : index
    %c0_25 = arith.constant 0 : index
    %90 = vector.load %arg4[%c8_24, %c0_25] : memref<16x128xf32, #tpu.memory_space<vmem>>, vector<8x128xf32>
    tpu.vector_store %arg4[%c8_24, %c0_25], %89 {strides = array<i32>} : memref<16x128xf32, #tpu.memory_space<vmem>>, vector<8x128xf32>,
    return
  }
  func.func @transform_0(%arg0: i32) -> (i32, i32) {
    %c0_i32 = arith.constant 0 : i32
    %c0_i32_0 = arith.constant 0 : i32
    %c0_i32_1 = arith.constant 0 : i32
    return %c0_i32, %c0_i32_0 : i32, i32
  }
  func.func @transform_1(%arg0: i32) -> (i32, i32) {
    %c0_i32 = arith.constant 0 : i32
    %c0_i32_0 = arith.constant 0 : i32
    %c0_i32_1 = arith.constant 0 : i32
    return %c0_i32, %c0_i32_0 : i32, i32
  }
  func.func @transform_2(%arg0: i32) -> (i32, i32) {
    %c0_i32 = arith.constant 0 : i32
    %c0_i32_0 = arith.constant 0 : i32
    return %arg0, %c0_i32 : i32, i32
  }
  func.func @transform_3(%arg0: i32) -> (i32, i32) {
    %c0_i32 = arith.constant 0 : i32
    %c0_i32_0 = arith.constant 0 : i32
    return %arg0, %c0_i32 : i32, i32
  }
}

</mosaic_0001>

<llo_original>
// kernel: tpu_custom_call.1
$region0: #{tpu_custom_call.1}
  #allocation0 [shape = 'u32[]', space=smem, size = 0x4, offset = 0x4, fixed_abs, tag = 'smem constant byte address 0x4 - core index']
  #allocation1 [shape = 'u32[72,128]{1,0:T(1,128)}', space=vmem, size = 0x9000, scoped, tag = 'internal scratch']
  #allocation2 [shape = 's32[1,1]{1,0:T(1,128)S(1)}', space=vmem, size = 0x200, scoped, tag = 'scoped memory for tpu_custom_call.1']
  #allocation3 [shape = 'f32[1,1]{1,0:T(1,128)S(1)}', space=vmem, size = 0x200, scoped, tag = 'scoped memory for tpu_custom_call.1']
  %s0 = inlined_call_operand.<no memory space> [shape: s32[1,1], index: 0, kind: input, shape index: {}]
  %s1 = inlined_call_operand.<no memory space> [shape: f32[1,1], index: 1, kind: input, shape index: {}]
  %s2 = inlined_call_operand.hbm [shape: f32[16,128], index: 2, kind: input, shape index: {}]
  %s3 = inlined_call_operand.hbm [shape: f32[16,128], index: 3, kind: output, shape index: {}]
  %s4 = sld [smem:[#allocation0]]
  $region26: #{tpu_custom_call.1} parent=0
    _
  %s6 = ssub.s32 1, %s4
  %s7 = scalar_select 0, %s6, %s4
  %v8 = vstv %s0
  %9 = vst [vmem:[#allocation2] sm:$0x1] %v8
  %v10 = vstv %s1
  %11 = vst [vmem:[#allocation3] sm:$0x1] %v10
  $region1: #{tpu_custom_call.1} parent=0
    #allocation4 [shape = 'u8[8192]{0}', space=vmem, size = 0x2000, scoped, tag = 'input window, operand 2, single buffered']
    #allocation5 [shape = 's32[1]{0}', space=sflag, size = 0x4, scoped, tag = 'scoped memory for tpu_custom_call.1']
    #allocation6 [shape = 's32[1]{0}', space=sflag, size = 0x4, scoped, tag = 'scoped memory for tpu_custom_call.1']
    #allocation7 [shape = 'u8[8192]{0}', space=vmem, size = 0x2000, scoped, tag = 'output window, operand 0, single buffered']
    %12 = vsyncpa [#allocation5], 0
    %13 = vsyncpa [#allocation6], 0
    // Predicated region
    $region2: #{tpu_custom_call.1} parent=1 // pred_check
      _
    $region3: #{tpu_custom_call.1} parent=1 // pred_check_branch
      %15 = sbr.rel (0) target = $region5
    $region4: #{tpu_custom_call.1} parent=1 // pred_region
      _
    $region5: #{tpu_custom_call.1} parent=1 // pred_fallthru
      _
    // Predicated region
    $region6: #{tpu_custom_call.1} parent=1 // pred_check
      _
    $region7: #{tpu_custom_call.1} parent=1 // pred_check_branch
      %17 = sbr.rel (0) target = $region9
    $region8: #{tpu_custom_call.1} parent=1 // pred_region
      _
    $region9: #{tpu_custom_call.1} parent=1 // pred_fallthru
      _
    // Predicated region
    $region10: #{tpu_custom_call.1} parent=1 // pred_check
      _
    $region11: #{tpu_custom_call.1} parent=1 // pred_check_branch
      %19 = sbr.rel (0) target = $region13
    $region12: #{tpu_custom_call.1} parent=1 // pred_region
      %21 = vsyncadd [#allocation5], 0
      %s22 = sshll.u32 %s2, 4
      %s23 = int_to_ptr.hbm [resolvable:$true] %s22
      %s24 = sshll.u32 [#allocation4], 4
      %s25 = int_to_ptr.vmem [resolvable:$true] %s24
      %30 = dma.hbm_to_vmem [thread:$0]  %s23, 256, %s25, [#allocation5], 128, 128, 8
    $region13: #{tpu_custom_call.1} parent=1 // pred_fallthru
      _
    // Predicated region
    $region14: #{tpu_custom_call.1} parent=1 // pred_check
      _
    $region15: #{tpu_custom_call.1} parent=1 // pred_check_branch
      %32 = sbr.rel (0) target = $region17
    $region16: #{tpu_custom_call.1} parent=1 // pred_region
      %34 = dma.done [#allocation5], 256
    $region17: #{tpu_custom_call.1} parent=1 // pred_fallthru
      _
    %v35 = vld [vmem:[#allocation2] sm:$0x1]
    %s36 = vtos %v35
    %v37 = vld [vmem:[#allocation3] sm:$0x1]
    %s38 = vtos %v37
    %v39 = vlaneseq
    %v40 = vshrl.u32 %v39, 7
    %v41 = vlaneseq
    %v42 = vand.u32 %v41, 127
    %v43 = vmul.u32 %v40, 128
    %v44 = vadd.s32 %v43, %v42
    %s45 = smul.u32 0, 2048
    %s46 = smul.u32 %s36, 2654435769
    %v47 = vmul.u32 %v44, 2
    %v48 = vstv %s45
    %v49 = vadd.s32 %v48, %v47
    %v50 = vstv %s46
    %v51 = vxor.u32 %v49, %v50
    %v52 = vshra.s32 %v51, 16
    %v53 = vand.u32 %v52, 65535
    %v54 = vxor.u32 %v51, %v53
    %v55 = vmul.u32 %v54, 2246822507
    %v56 = vshra.s32 %v55, 13
    %v57 = vand.u32 %v56, 524287
    %v58 = vxor.u32 %v55, %v57
    %v59 = vmul.u32 %v58, 3266489429
    %v60 = vshra.s32 %v59, 16
    %v61 = vand.u32 %v60, 65535
    %v62 = vxor.u32 %v59, %v61
    %v63 = vadd.s32 %v49, 1
    %v64 = vxor.u32 %v63, %v50
    %v65 = vshra.s32 %v64, 16
    %v66 = vand.u32 %v65, 65535
    %v67 = vxor.u32 %v64, %v66
    %v68 = vmul.u32 %v67, 2246822507
    %v69 = vshra.s32 %v68, 13
    %v70 = vand.u32 %v69, 524287
    %v71 = vxor.u32 %v68, %v70
    %v72 = vmul.u32 %v71, 3266489429
    %v73 = vshra.s32 %v72, 16
    %v74 = vand.u32 %v73, 65535
    %v75 = vxor.u32 %v72, %v74
    %v76 = vand.u32 %v62, 8388607
    %v77 = vcvt.s32.f32 %v76
    %v78 = vadd.f32 %v77, 0.5
    %v79 = vmul.f32 %v78, 1.1920929e-07
    %v80 = vand.u32 %v75, 8388607
    %v81 = vcvt.s32.f32 %v80
    %v82 = vadd.f32 %v81, 0.5
    %v83 = vmul.f32 %v82, 1.1920929e-07
    %v84 = vlog2.pop %v79
    %v85 = vmul.f32 %v84, 0.6931472
    %v86 = vmul.f32 %v85, -2.0
    %v87 = vrsqrt.pop %v86
    %v88 = vmul.f32 %v87, %v86
    %v89 = vmul.f32 %v88, %v87
    %v90 = vmul.f32 0.5, %v89
    %v91 = vsub.f32 1.5, %v90
    %v92 = vmul.f32 %v87, %v91
    %v93 = vmul.f32 %v86, %v92
    %vm94 = vcmp.eq.f32.partialorder %v86, inf
    %v95 = vsel %vm94, %v86, %v93
    %vm96 = vcmp.eq.f32.partialorder %v86, 0.0
    %v97 = vand.u32 %v86, 2147483648
    %v98 = vsel %vm96, %v97, %v95
    %v99 = vstv %s38
    %v100 = vmul.f32 %v98, %v99
    %v101 = vmul.f32 %v83, 6.2831855
    %v102 = vand.u32 2147483647, %v101
    %vm103 = vcmp.le.f32.partialorder %v102, 0.7853982
    %vm104 = vcmp.lt.s32.totalorder %v101, 0
    %v105 = vand.u32 %v101, 2139095040
    %v106 = vshrl.u32 %v105, 23
    %v107 = vsub.s32 %v106, 127
    %v108 = vand.u32 2147483647, %v101
    %v109 = vand.u32 %v108, 8388607
    %v110 = vor.u32 %v109, 8388608
    %v111 = vsub.s32 0, %v110
    %v112 = vadd.s32 %v107, 1
    %vm113 = vcmp.gt.s32.totalorder %v112, 0
    %v114 = vsel %vm113, %v112, 0
    %v115 = vshrl.u32 %v114, 5
    %v116 = vand.u32 %v114, 31
    %v117 = vsub.s32 32, %v116
    %v118 = vshrl.u32 683565275, %v117
    %v119 = vshll.u32 683565275, %v116
    %v120 = vshrl.u32 2475754826, %v117
    %v121 = vor.u32 %v119, %v120
    %v122 = vshll.u32 2475754826, %v116
    %v123 = vshrl.u32 2131351028, %v117
    %v124 = vor.u32 %v122, %v123
    %v125 = vshll.u32 2131351028, %v116
    %v126 = vshrl.u32 2102212464, %v117
    %v127 = vor.u32 %v125, %v126
    %v128 = vshll.u32 2102212464, %v116
    %v129 = vshrl.u32 920167782, %v117
    %v130 = vor.u32 %v128, %v129
    %v131 = vshll.u32 920167782, %v116
    %v132 = vshrl.u32 1326507024, %v117
    %v133 = vor.u32 %v131, %v132
    %vm134 = vcmp.lt.s32.totalorder %v115, 1
    %vm135 = vcmp.lt.s32.totalorder %v115, 2
    %vm136 = vcmp.lt.s32.totalorder %v115, 3
    %vm137 = vcmp.lt.s32.totalorder %v115, 4
    %v138 = vsel %vm134, %v118, %v121
    %v139 = vsel %vm137, %v127, 2102212464
    %v140 = vsel %vm136, %v124, %v139
    %v141 = vsel %vm135, %v138, %v140
    %v142 = vsel %vm134, %v121, %v124
    %v143 = vsel %vm137, %v130, 920167782
    %v144 = vsel %vm136, %v127, %v143
    %v145 = vsel %vm135, %v142, %v144
    %v146 = vsel %vm134, %v124, %v127
    %v147 = vsel %vm137, %v133, 1326507024
    %v148 = vsel %vm136, %v130, %v147
    %v149 = vsel %vm135, %v146, %v148
    %v150 = vshll.u32 %v110, 8
    %v151 = vand.u32 %v150, 65535
    %v152 = vshrl.u32 %v150, 16
    %v153 = vand.u32 %v149, 65535
    %v154 = vshrl.u32 %v149, 16
    %v155 = vmul.u32 %v151, %v153
    %v156 = vmul.u32 %v151, %v154
    %v157 = vmul.u32 %v152, %v153
    %v158 = vmul.u32 %v152, %v154
    %v159 = vshll.u32 %v156, 16
    %v160 = vshrl.u32 %v156, 16
    %v161 = vshll.u32 %v157, 16
    %v162 = vshrl.u32 %v157, 16
    %vm163 = vc.u32 %v155, %v159
    %v164 = vsel %vm163, 1, 0
    %v165 = vadd.s32 %v155, %v159
    %v166 = vadd.s32 %v158, %v164
    %vm167 = vc.u32 %v165, %v161
    %v168 = vsel %vm167, 1, 0
    %v169 = vadd.s32 %v165, %v161
    %v170 = vadd.s32 %v166, %v168
    %v171 = vadd.s32 %v170, %v160
    %v172 = vadd.s32 %v171, %v162
    %v173 = vand.u32 %v150, 65535
    %v174 = vshrl.u32 %v150, 16
    %v175 = vand.u32 %v145, 65535
    %v176 = vshrl.u32 %v145, 16
    %v177 = vmul.u32 %v173, %v175
    %v178 = vmul.u32 %v173, %v176
    %v179 = vmul.u32 %v174, %v175
    %v180 = vmul.u32 %v174, %v176
    %v181 = vshll.u32 %v178, 16
    %v182 = vshrl.u32 %v178, 16
    %v183 = vshll.u32 %v179, 16
    %v184 = vshrl.u32 %v179, 16
    %vm185 = vc.u32 %v177, %v181
    %v186 = vsel %vm185, 1, 0
    %v187 = vadd.s32 %v177, %v181
    %v188 = vadd.s32 %v180, %v186
    %vm189 = vc.u32 %v187, %v183
    %v190 = vsel %vm189, 1, 0
    %v191 = vadd.s32 %v187, %v183
    %v192 = vadd.s32 %v188, %v190
    %v193 = vadd.s32 %v192, %v182
    %v194 = vadd.s32 %v193, %v184
    %v195 = vmul.u32 %v150, %v141
    %v196 = vadd.s32 %v172, %v191
    %vm197 = vc.u32 %v172, %v191
    %v198 = vadd.s32 %v194, 1
    %v199 = vsel %vm197, %v198, %v194
    %v200 = vadd.s32 %v195, %v199
    %v201 = vadd.s32 %v200, 536870912
    %v202 = vshrl.u32 %v201, 30
    %v203 = vshll.u32 %v202, 30
    %v204 = vsub.s32 %v200, %v203
    %vm205 = vcmp.lt.s32.totalorder %v204, 0
    %v206 = vsub.s32 0, %v204
    %v207 = vsel %vm205, %v206, %v204
    %v208 = vclz %v207
    %v209 = vsub.s32 %v208, 2
    %vm210 = vcmp.gt.s32.totalorder 0, %v209
    %v211 = vsel %vm210, 0, %v209
    %v212 = vsub.s32 32, %v211
    %v213 = vshll.u32 %v204, %v211
    %v214 = vshrl.u32 %v196, %v212
    %v215 = vor.u32 %v213, %v214
    %v216 = vsub.s32 4294967266, %v211
    %v217 = vadd.s32 %v216, 127
    %v218 = vshll.u32 %v217, 23
    %v219 = vor.u32 4788187, %v218
    %v220 = vand.u32 2147483647, %v219
    %v222 = vcvt.s32.f32 %v215
    %v223 = vmul.f32 %v222, %v220
    %v224 = vxor.u32 %v223, 2147483648
    %v225 = vsel %vm104, %v224, %v223
    %v226 = vsub.s32 4, %v202
    %v227 = vsel %vm104, %v226, %v202
    %v228 = vsel %vm103, %v101, %v225
    %v229 = vsel %vm103, 0, %v227
    %v230 = vmul.f32 %v228, %v228
    %v231 = vmul.f32 %v230, -0.001358992
    %v232 = vadd.f32 %v231, 0.041655596
    %v233 = vmul.f32 %v230, %v232
    %v234 = vadd.f32 %v233, -0.4999988
    %v235 = vmul.f32 %v230, %v234
    %v236 = vadd.f32 1.0, %v235
    %v237 = vmul.f32 %v228, %v228
    %v238 = vmul.f32 %v237, -0.00019511016
    %v239 = vadd.f32 %v238, 0.008332121
    %v240 = vmul.f32 %v237, %v239
    %v241 = vadd.f32 %v240, -0.16666654
    %v242 = vmul.f32 %v237, %v241
    %v243 = vadd.f32 %v242, 1.0
    %v244 = vmul.f32 %v243, %v228
    %vm245 = vweird.f32 %v101
    %v246 = vand.u32 %v229, 3
    %vm247 = vcmp.lt.s32.totalorder %v246, 2
    %vm248 = vcmp.eq.s32.totalorder %v246, 0
    %v249 = vxor.u32 %v244, 2147483648
    %v250 = vsel %vm248, %v236, %v249
    %vm251 = vcmp.eq.s32.totalorder %v246, 2
    %v252 = vxor.u32 %v236, 2147483648
    %v253 = vsel %vm251, %v252, %v244
    %v254 = vsel %vm247, %v250, %v253
    %v255 = vsel %vm245, nan, %v254
    %v256 = vmul.f32 %v100, %v255
    %v257 = vand.u32 2147483647, %v101
    %vm258 = vcmp.le.f32.partialorder %v257, 0.7853982
    %vm259 = vcmp.lt.s32.totalorder %v101, 0
    %v260 = vand.u32 %v101, 2139095040
    %v261 = vshrl.u32 %v260, 23
    %v262 = vsub.s32 %v261, 127
    %v263 = vand.u32 2147483647, %v101
    %v264 = vand.u32 %v263, 8388607
    %v265 = vor.u32 %v264, 8388608
    %v266 = vsub.s32 0, %v265
    %v267 = vadd.s32 %v262, 1
    %vm268 = vcmp.gt.s32.totalorder %v267, 0
    %v269 = vsel %vm268, %v267, 0
    %v270 = vshrl.u32 %v269, 5
    %v271 = vand.u32 %v269, 31
    %v272 = vsub.s32 32, %v271
    %v273 = vshrl.u32 683565275, %v272
    %v274 = vshll.u32 683565275, %v271
    %v275 = vshrl.u32 2475754826, %v272
    %v276 = vor.u32 %v274, %v275
    %v277 = vshll.u32 2475754826, %v271
    %v278 = vshrl.u32 2131351028, %v272
    %v279 = vor.u32 %v277, %v278
    %v280 = vshll.u32 2131351028, %v271
    %v281 = vshrl.u32 2102212464, %v272
    %v282 = vor.u32 %v280, %v281
    %v283 = vshll.u32 2102212464, %v271
    %v284 = vshrl.u32 920167782, %v272
    %v285 = vor.u32 %v283, %v284
    %v286 = vshll.u32 920167782, %v271
    %v287 = vshrl.u32 1326507024, %v272
    %v288 = vor.u32 %v286, %v287
    %vm289 = vcmp.lt.s32.totalorder %v270, 1
    %vm290 = vcmp.lt.s32.totalorder %v270, 2
    %vm291 = vcmp.lt.s32.totalorder %v270, 3
    %vm292 = vcmp.lt.s32.totalorder %v270, 4
    %v293 = vsel %vm289, %v273, %v276
    %v294 = vsel %vm292, %v282, 2102212464
    %v295 = vsel %vm291, %v279, %v294
    %v296 = vsel %vm290, %v293, %v295
    %v297 = vsel %vm289, %v276, %v279
    %v298 = vsel %vm292, %v285, 920167782
    %v299 = vsel %vm291, %v282, %v298
    %v300 = vsel %vm290, %v297, %v299
    %v301 = vsel %vm289, %v279, %v282
    %v302 = vsel %vm292, %v288, 1326507024
    %v303 = vsel %vm291, %v285, %v302
    %v304 = vsel %vm290, %v301, %v303
    %v305 = vshll.u32 %v265, 8
    %v306 = vand.u32 %v305, 65535
    %v307 = vshrl.u32 %v305, 16
    %v308 = vand.u32 %v304, 65535
    %v309 = vshrl.u32 %v304, 16
    %v310 = vmul.u32 %v306, %v308
    %v311 = vmul.u32 %v306, %v309
    %v312 = vmul.u32 %v307, %v308
    %v313 = vmul.u32 %v307, %v309
    %v314 = vshll.u32 %v311, 16
    %v315 = vshrl.u32 %v311, 16
    %v316 = vshll.u32 %v312, 16
    %v317 = vshrl.u32 %v312, 16
    %vm318 = vc.u32 %v310, %v314
    %v319 = vsel %vm318, 1, 0
    %v320 = vadd.s32 %v310, %v314
    %v321 = vadd.s32 %v313, %v319
    %vm322 = vc.u32 %v320, %v316
    %v323 = vsel %vm322, 1, 0
    %v324 = vadd.s32 %v320, %v316
    %v325 = vadd.s32 %v321, %v323
    %v326 = vadd.s32 %v325, %v315
    %v327 = vadd.s32 %v326, %v317
    %v328 = vand.u32 %v305, 65535
    %v329 = vshrl.u32 %v305, 16
    %v330 = vand.u32 %v300, 65535
    %v331 = vshrl.u32 %v300, 16
    %v332 = vmul.u32 %v328, %v330
    %v333 = vmul.u32 %v328, %v331
    %v334 = vmul.u32 %v329, %v330
    %v335 = vmul.u32 %v329, %v331
    %v336 = vshll.u32 %v333, 16
    %v337 = vshrl.u32 %v333, 16
    %v338 = vshll.u32 %v334, 16
    %v339 = vshrl.u32 %v334, 16
    %vm340 = vc.u32 %v332, %v336
    %v341 = vsel %vm340, 1, 0
    %v342 = vadd.s32 %v332, %v336
    %v343 = vadd.s32 %v335, %v341
    %vm344 = vc.u32 %v342, %v338
    %v345 = vsel %vm344, 1, 0
    %v346 = vadd.s32 %v342, %v338
    %v347 = vadd.s32 %v343, %v345
    %v348 = vadd.s32 %v347, %v337
    %v349 = vadd.s32 %v348, %v339
    %v350 = vmul.u32 %v305, %v296
    %v351 = vadd.s32 %v327, %v346
    %vm352 = vc.u32 %v327, %v346
    %v353 = vadd.s32 %v349, 1
    %v354 = vsel %vm352, %v353, %v349
    %v355 = vadd.s32 %v350, %v354
    %v356 = vadd.s32 %v355, 536870912
    %v357 = vshrl.u32 %v356, 30
    %v358 = vshll.u32 %v357, 30
    %v359 = vsub.s32 %v355, %v358
    %vm360 = vcmp.lt.s32.totalorder %v359, 0
    %v361 = vsub.s32 0, %v359
    %v362 = vsel %vm360, %v361, %v359
    %v363 = vclz %v362
    %v364 = vsub.s32 %v363, 2
    %vm365 = vcmp.gt.s32.totalorder 0, %v364
    %v366 = vsel %vm365, 0, %v364
    %v367 = vsub.s32 32, %v366
    %v368 = vshll.u32 %v359, %v366
    %v369 = vshrl.u32 %v351, %v367
    %v370 = vor.u32 %v368, %v369
    %v371 = vsub.s32 4294967266, %v366
    %v372 = vadd.s32 %v371, 127
    %v373 = vshll.u32 %v372, 23
    %v374 = vor.u32 4788187, %v373
    %v375 = vand.u32 2147483647, %v374
    %v377 = vcvt.s32.f32 %v370
    %v378 = vmul.f32 %v377, %v375
    %v379 = vxor.u32 %v378, 2147483648
    %v380 = vsel %vm259, %v379, %v378
    %v381 = vsub.s32 4, %v357
    %v382 = vsel %vm259, %v381, %v357
    %v383 = vsel %vm258, %v101, %v380
    %v384 = vsel %vm258, 0, %v382
    %v385 = vmul.f32 %v383, %v383
    %v386 = vmul.f32 %v385, -0.001358992
    %v387 = vadd.f32 %v386, 0.041655596
    %v388 = vmul.f32 %v385, %v387
    %v389 = vadd.f32 %v388, -0.4999988
    %v390 = vmul.f32 %v385, %v389
    %v391 = vadd.f32 1.0, %v390
    %v392 = vmul.f32 %v383, %v383
    %v393 = vmul.f32 %v392, -0.00019511016
    %v394 = vadd.f32 %v393, 0.008332121
    %v395 = vmul.f32 %v392, %v394
    %v396 = vadd.f32 %v395, -0.16666654
    %v397 = vmul.f32 %v392, %v396
    %v398 = vadd.f32 %v397, 1.0
    %v399 = vmul.f32 %v398, %v383
    %vm400 = vweird.f32 %v101
    %v401 = vadd.s32 %v384, 3
    %v402 = vand.u32 %v401, 3
    %vm403 = vcmp.lt.s32.totalorder %v402, 2
    %vm404 = vcmp.eq.s32.totalorder %v402, 0
    %v405 = vxor.u32 %v399, 2147483648
    %v406 = vsel %vm404, %v391, %v405
    %vm407 = vcmp.eq.s32.totalorder %v402, 2
    %v408 = vxor.u32 %v391, 2147483648
    %v409 = vsel %vm407, %v408, %v399
    %v410 = vsel %vm403, %v406, %v409
    %v411 = vsel %vm400, nan, %v410
    %v412 = vmul.f32 %v100, %v411
    %v413 = vld [vmem:[#allocation4] sm:$0xff]
    %v414 = vmul.f32 %v413, %v256
    %415 = vst [vmem:[#allocation7] sm:$0xff] %v414
    %v416 = vld [vmem:[#allocation4 + $0x8] sm:$0xff]
    %v417 = vmul.f32 %v416, %v412
    %418 = vst [vmem:[#allocation7 + $0x8] sm:$0xff] %v417
    // Predicated region
    $region18: #{tpu_custom_call.1} parent=1 // pred_check
      _
    $region19: #{tpu_custom_call.1} parent=1 // pred_check_branch
      %420 = sbr.rel (0) target = $region21
    $region20: #{tpu_custom_call.1} parent=1 // pred_region
      %422 = vsyncadd [#allocation6], 0
      %s423 = sshll.u32 [#allocation7], 4
      %s424 = int_to_ptr.vmem [resolvable:$true] %s423
      %s425 = sshll.u32 %s3, 4
      %s426 = int_to_ptr.hbm [resolvable:$true] %s425
      %431 = dma.vmem_to_hbm [thread:$0]  %s424, 256, %s426, [#allocation6], 128, 128, 8
    $region21: #{tpu_custom_call.1} parent=1 // pred_fallthru
      _
    // Predicated region
    $region22: #{tpu_custom_call.1} parent=1 // pred_check
      _
    $region23: #{tpu_custom_call.1} parent=1 // pred_check_branch
      %433 = sbr.rel (0) target = $region25
    $region24: #{tpu_custom_call.1} parent=1 // pred_region
      %435 = dma.done [#allocation6], 256
    $region25: #{tpu_custom_call.1} parent=1 // pred_fallthru
      _
    %436 = vsyncpa [#allocation5], 1
    %437 = vsyncpa [#allocation6], 1

</llo_original>
